<compile_context>
chip_gen: v7x
topology: tpu7x:2x2x1
jax: 0.10.0
libtpu: 0.0.40
codegen_flags: <defaults>
</compile_context>

<pallas_src>
import functools

import jax
import jax.numpy as jnp
from jax.experimental import pallas as pl
from jax.experimental.pallas import tpu as pltpu


def _focal_tversky_kernel(pred_ref, label_ref, out_ref,
                          tp_acc, sump_acc, cnt_acc, *,
                          num_classes, alpha, beta, gamma, smooth, inv_nc):
    # pred_ref:  (N, C, TS) float logits tile
    # label_ref: (N, TS)    int32 labels tile (padding labeled -1)
    # out_ref:   (1, 1)     float32 scalar loss
    # tp_acc / sump_acc / cnt_acc: (N, C) f32 running sums (VMEM scratch)
    si = pl.program_id(0)

    @pl.when(si == 0)
    def _init():
        tp_acc[...] = jnp.zeros_like(tp_acc)
        sump_acc[...] = jnp.zeros_like(sump_acc)
        cnt_acc[...] = jnp.zeros_like(cnt_acc)

    pred = pred_ref[...].astype(jnp.float32)      # (N, C, TS)
    labels = label_ref[...]                       # (N, TS) int32
    p = jax.nn.sigmoid(pred)                      # (N, C, TS), one EUP pass

    # sum of probabilities per (n, c) — single cross-lane reduce per tile.
    sump_acc[...] += jnp.sum(p, axis=-1)          # (N, C)

    # Per-class masked sums: C is small, static unroll; 2-D compares only,
    # no (N, C, S) one-hot / iota temporaries.
    tp_cols = []
    cnt_cols = []
    for ci in range(num_classes):
        mask = labels == ci                                        # (N, TS)
        tp_cols.append(jnp.sum(jnp.where(mask, p[:, ci, :], 0.0),
                               axis=-1, keepdims=True))            # (N, 1)
        cnt_cols.append(jnp.sum(mask.astype(jnp.float32),
                                axis=-1, keepdims=True))           # (N, 1)
    tp_acc[...] += jnp.concatenate(tp_cols, axis=1)                # (N, C)
    cnt_acc[...] += jnp.concatenate(cnt_cols, axis=1)              # (N, C)

    @pl.when(si == pl.num_programs(0) - 1)
    def _finalize():
        tp = tp_acc[...]
        fp = sump_acc[...] - tp      # sum((1-onehot)*p)   == sum(p) - tp
        fn = cnt_acc[...] - tp       # sum(onehot*(1-p))   == count  - tp
        ti = (tp + smooth) / (tp + alpha * fp + beta * fn + smooth)
        one_minus = 1.0 - ti
        if float(gamma) == 2.0:
            focal = one_minus * one_minus
        else:
            focal = one_minus ** gamma
        loss = jnp.sum(focal) * inv_nc            # mean over (N, C)
        out_ref[...] = jnp.broadcast_to(loss, (1, 1))


def focal_tversky_loss(y_pred, y_true, *, alpha=0.7, beta=0.3, gamma=2.0,
                       smooth=1e-7, tile_lanes=512):
    """y_pred: (N, C, D, H, W) float logits; y_true: (N, 1, D, H, W) int labels."""
    n, c, d, h, w = y_pred.shape
    s = d * h * w

    # Keep the logit dtype from HBM (bf16 stays bf16 on the wire); labels int32.
    pred_flat = jnp.reshape(y_pred, (n, c, s))
    labels_flat = jnp.reshape(jnp.squeeze(y_true, axis=1), (n, s)).astype(jnp.int32)

    # Pad the spatial axis to a multiple of the tile so the grid divides evenly.
    ts = int(tile_lanes)                          # multiple of 128
    num_tiles = pl.cdiv(s, ts)
    s_pad = num_tiles * ts
    if s_pad != s:
        pad = s_pad - s
        # pred pad -> sigmoid(-1e9) == 0 (no sum_p contribution);
        # label pad -> -1 matches no class (no tp / count contribution).
        pred_flat = jnp.pad(pred_flat, ((0, 0), (0, 0), (0, pad)),
                            constant_values=-1e9)
        labels_flat = jnp.pad(labels_flat, ((0, 0), (0, pad)),
                              constant_values=-1)

    kernel = functools.partial(
        _focal_tversky_kernel, num_classes=c,
        alpha=float(alpha), beta=float(beta), gamma=float(gamma),
        smooth=float(smooth), inv_nc=1.0 / (n * c))

    # VMEM budget derived from the tile: 2x double-buffered input tiles
    # (x2 safety) + headroom for scratch/output; clamp to the scoped default.
    pred_tile_bytes = n * c * ts * pred_flat.dtype.itemsize
    lab_tile_bytes = n * ts * labels_flat.dtype.itemsize
    vmem_bytes = 4 * (pred_tile_bytes + lab_tile_bytes) + (2 << 20)
    vmem_bytes = int(min(max(vmem_bytes, 4 << 20), 32 << 20))

    out = pl.pallas_call(
        kernel,
        out_shape=jax.ShapeDtypeStruct((1, 1), jnp.float32),
        grid_spec=pltpu.PrefetchScalarGridSpec(
            num_scalar_prefetch=0,
            grid=(num_tiles,),
            in_specs=[
                pl.BlockSpec((n, c, ts), lambda si: (0, 0, si)),
                pl.BlockSpec((n, ts), lambda si: (0, si)),
            ],
            out_specs=pl.BlockSpec((1, 1), lambda si: (0, 0)),
            scratch_shapes=[
                pltpu.VMEM((n, c), jnp.float32),   # tp accumulator
                pltpu.VMEM((n, c), jnp.float32),   # sum_p accumulator
                pltpu.VMEM((n, c), jnp.float32),   # count accumulator
            ],
        ),
        compiler_params=pltpu.CompilerParams(
            dimension_semantics=("arbitrary",),
            vmem_limit_bytes=vmem_bytes,
        ),
    )(pred_flat, labels_flat)
    return out[0, 0]


def _reference(y_pred, y_true, alpha=0.7, beta=0.3, gamma=2.0, smooth=1e-7):
    # pure-JAX reference mirroring the PyTorch module
    p = jax.nn.sigmoid(y_pred.astype(jnp.float32))              # (N,C,D,H,W)
    c = y_pred.shape[1]
    labels = jnp.squeeze(y_true, axis=1).astype(jnp.int32)      # (N,D,H,W)
    onehot = jax.nn.one_hot(labels, c, dtype=jnp.float32)       # (N,D,H,W,C)
    onehot = jnp.transpose(onehot, (0, 4, 1, 2, 3))             # (N,C,D,H,W)
    tp = jnp.sum(onehot * p, axis=(2, 3, 4))
    fp = jnp.sum((1 - onehot) * p, axis=(2, 3, 4))
    fn = jnp.sum(onehot * (1 - p), axis=(2, 3, 4))
    ti = (tp + smooth) / (tp + alpha * fp + beta * fn + smooth)
    return jnp.mean((1 - ti) ** gamma)


if __name__ == "__main__":
    key = jax.random.PRNGKey(0)
    k_pred, k_true = jax.random.split(key)

    N, C, D, H, W = 2, 4, 8, 16, 16          # S = 2048 -> 4 grid steps of 512
    y_pred = jax.random.normal(k_pred, (N, C, D, H, W), dtype=jnp.float32)
    y_true = jax.random.randint(k_true, (N, 1, D, H, W), 0, C, dtype=jnp.int32)

    loss = jax.block_until_ready(focal_tversky_loss(y_pred, y_true))
    ref = jax.block_until_ready(_reference(y_pred, y_true))

    assert jnp.isfinite(loss), "loss is not finite"
    assert jnp.allclose(loss, ref, rtol=1e-5, atol=1e-6), (loss, ref)
    print("KERNEL_OK")
</pallas_src>

<mosaic_0001>
module attributes {stable_mosaic.version = 11 : i64} {
  func.func @_focal_tversky_kernel(%arg0: i32, %arg1: memref<2x4x512xf32, #tpu.memory_space<vmem>>, %arg2: memref<2x512xi32, #tpu.memory_space<vmem>>, %arg3: memref<1x1xf32, #tpu.memory_space<vmem>>, %arg4: memref<2x4xf32, #tpu.memory_space<vmem>>, %arg5: memref<2x4xf32, #tpu.memory_space<vmem>>, %arg6: memref<2x4xf32, #tpu.memory_space<vmem>>) attributes {dimension_semantics = [#tpu.dimension_semantics<arbitrary>], iteration_bounds = array<i64: 4>, scalar_prefetch = 0 : i64, scratch_operands = 3 : i64, tpu.core_type = #tpu.core_type<tc>, window_params = [{transform_indices = @transform_0, window_bounds = array<i64: 2, 4, 512>}, {transform_indices = @transform_1, window_bounds = array<i64: 2, 512>}, {pipeline_mode = #tpu.pipeline_mode<synchronous>, transform_indices = @transform_2, window_bounds = array<i64: 1, 1>}]} {
    %c0_i32 = arith.constant 0 : i32
    %0 = arith.cmpi eq, %arg0, %c0_i32 : i32
    %1 = arith.extui %0 : i1 to i32
    %c0_i32_0 = arith.constant 0 : i32
    %2 = arith.cmpi ne, %1, %c0_i32_0 : i32
    scf.if %2 {
      %cst_33 = arith.constant 0.000000e+00 : f32
      %73 = vector.broadcast %cst_33 : f32 to vector<2x4xf32>
      %c0_34 = arith.constant 0 : index
      %c0_35 = arith.constant 0 : index
      %74 = vector.load %arg4[%c0_34, %c0_35] : memref<2x4xf32, #tpu.memory_space<vmem>>, vector<2x4xf32>
      tpu.vector_store %arg4[%c0_34, %c0_35], %73 {strides = array<i32>} : memref<2x4xf32, #tpu.memory_space<vmem>>, vector<2x4xf32>,
      %cst_36 = arith.constant 0.000000e+00 : f32
      %75 = vector.broadcast %cst_36 : f32 to vector<2x4xf32>
      %c0_37 = arith.constant 0 : index
      %c0_38 = arith.constant 0 : index
      %76 = vector.load %arg5[%c0_37, %c0_38] : memref<2x4xf32, #tpu.memory_space<vmem>>, vector<2x4xf32>
      tpu.vector_store %arg5[%c0_37, %c0_38], %75 {strides = array<i32>} : memref<2x4xf32, #tpu.memory_space<vmem>>, vector<2x4xf32>,
      %cst_39 = arith.constant 0.000000e+00 : f32
      %77 = vector.broadcast %cst_39 : f32 to vector<2x4xf32>
      %c0_40 = arith.constant 0 : index
      %c0_41 = arith.constant 0 : index
      %78 = vector.load %arg6[%c0_40, %c0_41] : memref<2x4xf32, #tpu.memory_space<vmem>>, vector<2x4xf32>
      tpu.vector_store %arg6[%c0_40, %c0_41], %77 {strides = array<i32>} : memref<2x4xf32, #tpu.memory_space<vmem>>, vector<2x4xf32>,
    } else {
    }
    %c0 = arith.constant 0 : index
    %c0_1 = arith.constant 0 : index
    %c0_2 = arith.constant 0 : index
    %3 = vector.load %arg1[%c0, %c0_1, %c0_2] : memref<2x4x512xf32, #tpu.memory_space<vmem>>, vector<2x4x512xf32>
    %c0_3 = arith.constant 0 : index
    %c0_4 = arith.constant 0 : index
    %4 = vector.load %arg2[%c0_3, %c0_4] : memref<2x512xi32, #tpu.memory_space<vmem>>, vector<2x512xi32>
    %5 = arith.negf %3 : vector<2x4x512xf32>
    %6 = math.exp %5 : vector<2x4x512xf32>
    %cst = arith.constant 1.000000e+00 : f32
    %7 = vector.broadcast %cst : f32 to vector<2x4x512xf32>
    %8 = arith.addf %7, %6 : vector<2x4x512xf32>
    %9 = arith.divf %7, %8 : vector<2x4x512xf32>
    %c0_5 = arith.constant 0 : index
    %c0_6 = arith.constant 0 : index
    %10 = vector.load %arg5[%c0_5, %c0_6] : memref<2x4xf32, #tpu.memory_space<vmem>>, vector<2x4xf32>
    %cst_7 = arith.constant dense<0.000000e+00> : vector<2x4xf32>
    %11 = vector.multi_reduction <add>, %9, %cst_7 [2] : vector<2x4x512xf32> to vector<2x4xf32>
    %12 = arith.addf %10, %11 : vector<2x4xf32>
    %c0_8 = arith.constant 0 : index
    %c0_9 = arith.constant 0 : index
    %13 = vector.load %arg5[%c0_8, %c0_9] : memref<2x4xf32, #tpu.memory_space<vmem>>, vector<2x4xf32>
    tpu.vector_store %arg5[%c0_8, %c0_9], %12 {strides = array<i32>} : memref<2x4xf32, #tpu.memory_space<vmem>>, vector<2x4xf32>,
    %c0_i32_10 = arith.constant 0 : i32
    %14 = vector.broadcast %c0_i32_10 : i32 to vector<2x512xi32>
    %15 = arith.cmpi eq, %4, %14 : vector<2x512xi32>
    %16 = vector.extract_strided_slice %9 {offsets = [0, 0, 0], sizes = [2, 1, 512], strides = [1, 1, 1]} : vector<2x4x512xf32> to vector<2x1x512xf32>
    %17 = vector.shape_cast %16 : vector<2x1x512xf32> to vector<2x512xf32>
    %cst_11 = arith.constant 0.000000e+00 : f32
    %18 = vector.broadcast %cst_11 : f32 to vector<2x512xf32>
    %19 = arith.select %15, %17, %18 : vector<2x512xi1>, vector<2x512xf32>
    %cst_12 = arith.constant dense<0.000000e+00> : vector<2xf32>
    %20 = vector.multi_reduction <add>, %19, %cst_12 [1] : vector<2x512xf32> to vector<2xf32>
    %21 = vector.shape_cast %20 : vector<2xf32> to vector<2x1xf32>
    %22 = arith.extui %15 : vector<2x512xi1> to vector<2x512xi32>
    %23 = arith.sitofp %22 : vector<2x512xi32> to vector<2x512xf32>
    %cst_13 = arith.constant dense<0.000000e+00> : vector<2xf32>
    %24 = vector.multi_reduction <add>, %23, %cst_13 [1] : vector<2x512xf32> to vector<2xf32>
    %25 = vector.shape_cast %24 : vector<2xf32> to vector<2x1xf32>
    %c1_i32 = arith.constant 1 : i32
    %26 = vector.broadcast %c1_i32 : i32 to vector<2x512xi32>
    %27 = arith.cmpi eq, %4, %26 : vector<2x512xi32>
    %28 = vector.extract_strided_slice %9 {offsets = [0, 1, 0], sizes = [2, 1, 512], strides = [1, 1, 1]} : vector<2x4x512xf32> to vector<2x1x512xf32>
    %29 = vector.shape_cast %28 : vector<2x1x512xf32> to vector<2x512xf32>
    %cst_14 = arith.constant 0.000000e+00 : f32
    %30 = vector.broadcast %cst_14 : f32 to vector<2x512xf32>
    %31 = arith.select %27, %29, %30 : vector<2x512xi1>, vector<2x512xf32>
    %cst_15 = arith.constant dense<0.000000e+00> : vector<2xf32>
    %32 = vector.multi_reduction <add>, %31, %cst_15 [1] : vector<2x512xf32> to vector<2xf32>
    %33 = vector.shape_cast %32 : vector<2xf32> to vector<2x1xf32>
    %34 = arith.extui %27 : vector<2x512xi1> to vector<2x512xi32>
    %35 = arith.sitofp %34 : vector<2x512xi32> to vector<2x512xf32>
    %cst_16 = arith.constant dense<0.000000e+00> : vector<2xf32>
    %36 = vector.multi_reduction <add>, %35, %cst_16 [1] : vector<2x512xf32> to vector<2xf32>
    %37 = vector.shape_cast %36 : vector<2xf32> to vector<2x1xf32>
    %c2_i32 = arith.constant 2 : i32
    %38 = vector.broadcast %c2_i32 : i32 to vector<2x512xi32>
    %39 = arith.cmpi eq, %4, %38 : vector<2x512xi32>
    %40 = vector.extract_strided_slice %9 {offsets = [0, 2, 0], sizes = [2, 1, 512], strides = [1, 1, 1]} : vector<2x4x512xf32> to vector<2x1x512xf32>
    %41 = vector.shape_cast %40 : vector<2x1x512xf32> to vector<2x512xf32>
    %cst_17 = arith.constant 0.000000e+00 : f32
    %42 = vector.broadcast %cst_17 : f32 to vector<2x512xf32>
    %43 = arith.select %39, %41, %42 : vector<2x512xi1>, vector<2x512xf32>
    %cst_18 = arith.constant dense<0.000000e+00> : vector<2xf32>
    %44 = vector.multi_reduction <add>, %43, %cst_18 [1] : vector<2x512xf32> to vector<2xf32>
    %45 = vector.shape_cast %44 : vector<2xf32> to vector<2x1xf32>
    %46 = arith.extui %39 : vector<2x512xi1> to vector<2x512xi32>
    %47 = arith.sitofp %46 : vector<2x512xi32> to vector<2x512xf32>
    %cst_19 = arith.constant dense<0.000000e+00> : vector<2xf32>
    %48 = vector.multi_reduction <add>, %47, %cst_19 [1] : vector<2x512xf32> to vector<2xf32>
    %49 = vector.shape_cast %48 : vector<2xf32> to vector<2x1xf32>
    %c3_i32 = arith.constant 3 : i32
    %50 = vector.broadcast %c3_i32 : i32 to vector<2x512xi32>
    %51 = arith.cmpi eq, %4, %50 : vector<2x512xi32>
    %52 = vector.extract_strided_slice %9 {offsets = [0, 3, 0], sizes = [2, 1, 512], strides = [1, 1, 1]} : vector<2x4x512xf32> to vector<2x1x512xf32>
    %53 = vector.shape_cast %52 : vector<2x1x512xf32> to vector<2x512xf32>
    %cst_20 = arith.constant 0.000000e+00 : f32
    %54 = vector.broadcast %cst_20 : f32 to vector<2x512xf32>
    %55 = arith.select %51, %53, %54 : vector<2x512xi1>, vector<2x512xf32>
    %cst_21 = arith.constant dense<0.000000e+00> : vector<2xf32>
    %56 = vector.multi_reduction <add>, %55, %cst_21 [1] : vector<2x512xf32> to vector<2xf32>
    %57 = vector.shape_cast %56 : vector<2xf32> to vector<2x1xf32>
    %58 = arith.extui %51 : vector<2x512xi1> to vector<2x512xi32>
    %59 = arith.sitofp %58 : vector<2x512xi32> to vector<2x512xf32>
    %cst_22 = arith.constant dense<0.000000e+00> : vector<2xf32>
    %60 = vector.multi_reduction <add>, %59, %cst_22 [1] : vector<2x512xf32> to vector<2xf32>
    %61 = vector.shape_cast %60 : vector<2xf32> to vector<2x1xf32>
    %c0_23 = arith.constant 0 : index
    %c0_24 = arith.constant 0 : index
    %62 = vector.load %arg4[%c0_23, %c0_24] : memref<2x4xf32, #tpu.memory_space<vmem>>, vector<2x4xf32>
    %63 = tpu.concatenate %21, %33, %45, %57 in 1 : vector<2x1xf32>, vector<2x1xf32>, vector<2x1xf32>, vector<2x1xf32> -> vector<2x4xf32>
    %64 = arith.addf %62, %63 : vector<2x4xf32>
    %c0_25 = arith.constant 0 : index
    %c0_26 = arith.constant 0 : index
    %65 = vector.load %arg4[%c0_25, %c0_26] : memref<2x4xf32, #tpu.memory_space<vmem>>, vector<2x4xf32>
    tpu.vector_store %arg4[%c0_25, %c0_26], %64 {strides = array<i32>} : memref<2x4xf32, #tpu.memory_space<vmem>>, vector<2x4xf32>,
    %c0_27 = arith.constant 0 : index
    %c0_28 = arith.constant 0 : index
    %66 = vector.load %arg6[%c0_27, %c0_28] : memref<2x4xf32, #tpu.memory_space<vmem>>, vector<2x4xf32>
    %67 = tpu.concatenate %25, %37, %49, %61 in 1 : vector<2x1xf32>, vector<2x1xf32>, vector<2x1xf32>, vector<2x1xf32> -> vector<2x4xf32>
    %68 = arith.addf %66, %67 : vector<2x4xf32>
    %c0_29 = arith.constant 0 : index
    %c0_30 = arith.constant 0 : index
    %69 = vector.load %arg6[%c0_29, %c0_30] : memref<2x4xf32, #tpu.memory_space<vmem>>, vector<2x4xf32>
    tpu.vector_store %arg6[%c0_29, %c0_30], %68 {strides = array<i32>} : memref<2x4xf32, #tpu.memory_space<vmem>>, vector<2x4xf32>,
    %c3_i32_31 = arith.constant 3 : i32
    %70 = arith.cmpi eq, %arg0, %c3_i32_31 : i32
    %71 = arith.extui %70 : i1 to i32
    %c0_i32_32 = arith.constant 0 : i32
    %72 = arith.cmpi ne, %71, %c0_i32_32 : i32
    scf.if %72 {
      %c0_33 = arith.constant 0 : index
      %c0_34 = arith.constant 0 : index
      %73 = vector.load %arg4[%c0_33, %c0_34] : memref<2x4xf32, #tpu.memory_space<vmem>>, vector<2x4xf32>
      %c0_35 = arith.constant 0 : index
      %c0_36 = arith.constant 0 : index
      %74 = vector.load %arg5[%c0_35, %c0_36] : memref<2x4xf32, #tpu.memory_space<vmem>>, vector<2x4xf32>
      %75 = arith.subf %74, %73 : vector<2x4xf32>
      %c0_37 = arith.constant 0 : index
      %c0_38 = arith.constant 0 : index
      %76 = vector.load %arg6[%c0_37, %c0_38] : memref<2x4xf32, #tpu.memory_space<vmem>>, vector<2x4xf32>
      %77 = arith.subf %76, %73 : vector<2x4xf32>
      %cst_39 = arith.constant 1.000000e-07 : f32
      %78 = vector.broadcast %cst_39 : f32 to vector<2x4xf32>
      %79 = arith.addf %73, %78 : vector<2x4xf32>
      %cst_40 = arith.constant 0.699999988 : f32
      %80 = vector.broadcast %cst_40 : f32 to vector<2x4xf32>
      %81 = arith.mulf %80, %75 : vector<2x4xf32>
      %82 = arith.addf %73, %81 : vector<2x4xf32>
      %cst_41 = arith.constant 3.000000e-01 : f32
      %83 = vector.broadcast %cst_41 : f32 to vector<2x4xf32>
      %84 = arith.mulf %83, %77 : vector<2x4xf32>
      %85 = arith.addf %82, %84 : vector<2x4xf32>
      %cst_42 = arith.constant 1.000000e-07 : f32
      %86 = vector.broadcast %cst_42 : f32 to vector<2x4xf32>
      %87 = arith.addf %85, %86 : vector<2x4xf32>
      %88 = arith.divf %79, %87 : vector<2x4xf32>
      %cst_43 = arith.constant 1.000000e+00 : f32
      %89 = vector.broadcast %cst_43 : f32 to vector<2x4xf32>
      %90 = arith.subf %89, %88 : vector<2x4xf32>
      %91 = arith.mulf %90, %90 : vector<2x4xf32>
      %92 = vector.shape_cast %91 : vector<2x4xf32> to vector<1x2x4xf32>
      %cst_44 = arith.constant dense<0.000000e+00> : vector<1xf32>
      %93 = vector.multi_reduction <add>, %92, %cst_44 [1, 2] : vector<1x2x4xf32> to vector<1xf32>
      %94 = vector.shape_cast %93 : vector<1xf32> to vector<1x1x1xf32>
      %95 = vector.extract %94[0, 0, 0] : f32 from vector<1x1x1xf32>
      %cst_45 = arith.constant 1.250000e-01 : f32
      %96 = arith.mulf %95, %cst_45 : f32
      %97 = vector.broadcast %96 : f32 to vector<1x1xf32>
      %c0_46 = arith.constant 0 : index
      %c0_47 = arith.constant 0 : index
      %98 = vector.load %arg3[%c0_46, %c0_47] : memref<1x1xf32, #tpu.memory_space<vmem>>, vector<1x1xf32>
      tpu.vector_store %arg3[%c0_46, %c0_47], %97 {strides = array<i32>} : memref<1x1xf32, #tpu.memory_space<vmem>>, vector<1x1xf32>,
    } else {
    }
    return
  }
  func.func @transform_0(%arg0: i32) -> (i32, i32, i32) {
    %c0_i32 = arith.constant 0 : i32
    %c0_i32_0 = arith.constant 0 : i32
    %c0_i32_1 = arith.constant 0 : i32
    return %c0_i32, %c0_i32_0, %arg0 : i32, i32, i32
  }
  func.func @transform_1(%arg0: i32) -> (i32, i32) {
    %c0_i32 = arith.constant 0 : i32
    %c0_i32_0 = arith.constant 0 : i32
    return %c0_i32, %arg0 : i32, i32
  }
  func.func @transform_2(%arg0: i32) -> (i32, i32) {
    %c0_i32 = arith.constant 0 : i32
    %c0_i32_0 = arith.constant 0 : i32
    %c0_i32_1 = arith.constant 0 : i32
    return %c0_i32, %c0_i32_0 : i32, i32
  }
}

</mosaic_0001>

<llo_original>
// kernel: tpu_custom_call.1
$region0: #{tpu_custom_call.1}
  #allocation0 [shape = 'u32[]', space=smem, size = 0x4, offset = 0x4, fixed_abs, tag = 'smem constant byte address 0x4 - core index']
  #allocation1 [shape = 'u32[144,128]{1,0:T(1,128)}', space=vmem, size = 0x12000, scoped, tag = 'internal scratch']
  #allocation2 [shape = 'f32[2,4]{1,0:T(2,128)}', space=vmem, size = 0x400, scoped, tag = 'scratch operand']
  #allocation3 [shape = 'f32[2,4]{1,0:T(2,128)}', space=vmem, size = 0x400, scoped, tag = 'scratch operand']
  #allocation4 [shape = 'f32[2,4]{1,0:T(2,128)}', space=vmem, size = 0x400, scoped, tag = 'scratch operand']
  %s0 = inlined_call_operand.hbm [shape: f32[2,4,2048], index: 0, kind: input, shape index: {}]
  %s1 = inlined_call_operand.hbm [shape: s32[2,2048], index: 1, kind: input, shape index: {}]
  %s2 = inlined_call_operand.hbm [shape: f32[1,1], index: 2, kind: output, shape index: {}]
  %s3 = sld [smem:[#allocation0]]
  $region57: #{tpu_custom_call.1} parent=0
    _
  %s5 = ssub.s32 1, %s3
  %s6 = scalar_select 0, %s5, %s3
  $region1: #{tpu_custom_call.1} parent=0
    #allocation5 [shape = 'u8[32768]{0}', space=vmem, size = 0x8000, scoped, tag = 'input window, operand 0']
    #allocation6 [shape = 's32[2]{0}', space=sflag, size = 0x8, scoped, tag = 'scoped memory for tpu_custom_call.1']
    #allocation7 [shape = 's32[2]{0}', space=sflag, size = 0x8, scoped, tag = 'scoped memory for tpu_custom_call.1']
    #allocation8 [shape = 'u8[8192]{0}', space=vmem, size = 0x2000, scoped, tag = 'input window, operand 1']
    #allocation9 [shape = 's32[2]{0}', space=sflag, size = 0x8, scoped, tag = 'scoped memory for tpu_custom_call.1']
    #allocation10 [shape = 'u8[512]{0}', space=vmem, size = 0x400, scoped, tag = 'output window, operand 0, single buffered']
    %7 = vsyncpa [#allocation6], 0
    %s8 = scalar_lea.sflag [#allocation6], 1
    %9 = vsyncpa %s8, 0
    %10 = vsyncpa [#allocation9], 0
    %s11 = scalar_lea.sflag [#allocation9], 1
    %12 = vsyncpa %s11, 0
    %13 = vsyncpa [#allocation7], 0
    loop: start=0, step=1, limit=6
    $region2: #{tpu_custom_call.1} parent=1 // loop_pre_header
      _
    $region3: #{tpu_custom_call.1} parent=1 // loop_header
      %s15 = sphi 0, %s19
      %p16 = scmp.ge.s32.totalorder %s15, 6
      %s25 = sphi 0, %s27
      %s28 = sphi 0, %s25
      %s29 = sphi 0, %s28
      %s45 = sphi 0, %s29
      %s51 = sphi 0, %s53
      %s54 = sphi 0, %s51
      %s55 = sphi 0, %s54
      %s71 = sphi 0, %s55
      %s75 = sphi 0, %s75
      %s77 = sphi 0, %s75
      %s78 = sphi 0, %s77
      %s92 = sphi 0, %s78
    $region4: #{tpu_custom_call.1} parent=1 // loop_header_branch
      %18 = sbr.rel (%p16) target = $region8
    $region5: #{tpu_custom_call.1} parent=1 // loop_body
      %s20 = ssub.s32 %s15, 1
      %s21 = ssub.s32 %s15, 2
      %s22 = sadd.s32 %s15, 1
      %s23 = ssub.s32 %s15, %s22
      %p24 = scmp.eq.s32.totalorder %s23, 0
      %s26 = sadd.s32 %s25, 1
      %s27 = scalar_select %p24, %s25, %s26
      %p30 = pneg %p24
      %p31 = scmp.eq.s32.totalorder %s15, 3
      %p32 = por %p30, %p31
      %p33 = scmp.ne.s32.totalorder %s25, %s28
      %p34 = scmp.eq.s32.totalorder %s15, 0
      %p35 = por %p33, %p34
      %p36 = scmp.ne.s32.totalorder %s25, %s28
      %p37 = scmp.eq.s32.totalorder %s20, 3
      %p38 = por %p36, %p37
      %p39 = scmp.ne.s32.totalorder %s28, %s29
      %p40 = scmp.eq.s32.totalorder %s20, 0
      %p41 = por %p39, %p40
      %p42 = scmp.ne.s32.totalorder %s28, %s29
      %p43 = scmp.eq.s32.totalorder %s21, 3
      %p44 = por %p42, %p43
      %p46 = scmp.ne.s32.totalorder %s29, %s45
      %p47 = scmp.eq.s32.totalorder %s21, 0
      %p48 = por %p46, %p47
      %s49 = ssub.s32 %s15, %s22
      %p50 = scmp.eq.s32.totalorder %s49, 0
      %s52 = sadd.s32 %s51, 1
      %s53 = scalar_select %p50, %s51, %s52
      %p56 = pneg %p50
      %p57 = scmp.eq.s32.totalorder %s15, 3
      %p58 = por %p56, %p57
      %p59 = scmp.ne.s32.totalorder %s51, %s54
      %p60 = scmp.eq.s32.totalorder %s15, 0
      %p61 = por %p59, %p60
      %p62 = scmp.ne.s32.totalorder %s51, %s54
      %p63 = scmp.eq.s32.totalorder %s20, 3
      %p64 = por %p62, %p63
      %p65 = scmp.ne.s32.totalorder %s54, %s55
      %p66 = scmp.eq.s32.totalorder %s20, 0
      %p67 = por %p65, %p66
      %p68 = scmp.ne.s32.totalorder %s54, %s55
      %p69 = scmp.eq.s32.totalorder %s21, 3
      %p70 = por %p68, %p69
      %p72 = scmp.ne.s32.totalorder %s55, %s71
      %p73 = scmp.eq.s32.totalorder %s21, 0
      %p74 = por %p72, %p73
      %s76 = sadd.s32 %s75, 1
      %p79 = scmp.eq.s32.totalorder %s15, 3
      %p80 = scmp.ne.s32.totalorder %s75, %s77
      %p81 = scmp.eq.s32.totalorder %s15, 0
      %p82 = por %p80, %p81
      %p83 = scmp.ne.s32.totalorder %s75, %s77
      %p84 = scmp.eq.s32.totalorder %s20, 3
      %p85 = por %p83, %p84
      %p86 = scmp.ne.s32.totalorder %s77, %s78
      %p87 = scmp.eq.s32.totalorder %s20, 0
      %p88 = por %p86, %p87
      %p89 = scmp.ne.s32.totalorder %s77, %s78
      %p90 = scmp.eq.s32.totalorder %s21, 3
      %p91 = por %p89, %p90
      %p93 = scmp.ne.s32.totalorder %s78, %s92
      %p94 = scmp.eq.s32.totalorder %s21, 0
      %p95 = por %p93, %p94
      %p96 = scmp.le.s32.totalorder 1, %s15
      %p97 = scmp.lt.s32.totalorder %s15, 5
      %p98 = pnand %p96, %p97
      %p99 = pneg %p98
      // Predicated region
      $region9: #{tpu_custom_call.1} parent=5 // pred_check
        _
      $region10: #{tpu_custom_call.1} parent=5 // pred_check_branch
        %101 = sbr.rel (%p98) target = $region12
      $region11: #{tpu_custom_call.1} parent=5 // pred_region
        %s102 = ssub.s32 %s15, 1
      $region12: #{tpu_custom_call.1} parent=5 // pred_fallthru
        _
      %p103 = scmp.lt.s32.totalorder %s15, 4
      // Predicated region
      $region13: #{tpu_custom_call.1} parent=5 // pred_check
        %p104 = pneg %p103
      $region14: #{tpu_custom_call.1} parent=5 // pred_check_branch
        %106 = sbr.rel (%p104) target = $region16
      $region15: #{tpu_custom_call.1} parent=5 // pred_region
        // Predicated region
        $region17: #{tpu_custom_call.1} parent=15 // pred_check
          %p107 = pneg %p35
        $region18: #{tpu_custom_call.1} parent=15 // pred_check_branch
          %109 = sbr.rel (%p107) target = $region20
        $region19: #{tpu_custom_call.1} parent=15 // pred_region
          %s110 = sand.u32 %s25, 1
          %s111 = scalar_lea.sflag [#allocation6], %s110
          %s112 = sand.u32 %s25, 1
          %s113 = smul.addr %s112, 32
          %s114 = scalar_lea.vmem [#allocation5], %s113
          %s115 = smul.u32 4, %s15
          %s117 = ssub.s32 512, 512
          %118 = vsyncadd %s111, %s117
          %s119 = smul.addr %s115, 64
          %s120 = scalar_lea.hbm %s0, %s119
          %s121 = sshll.u32 %s114, 4
          %s122 = int_to_ptr.vmem [resolvable:$true] %s121
          %127 = dma.hbm_to_vmem [thread:$0]  %s120, 512, %s122, %s111, 1024, 256, 16
        $region20: #{tpu_custom_call.1} parent=15 // pred_fallthru
          _
        // Predicated region
        $region21: #{tpu_custom_call.1} parent=15 // pred_check
          %p128 = pneg %p61
        $region22: #{tpu_custom_call.1} parent=15 // pred_check_branch
          %130 = sbr.rel (%p128) target = $region24
        $region23: #{tpu_custom_call.1} parent=15 // pred_region
          %s131 = sand.u32 %s51, 1
          %s132 = scalar_lea.sflag [#allocation9], %s131
          %s133 = sand.u32 %s51, 1
          %s134 = smul.addr %s133, 8
          %s135 = scalar_lea.vmem [#allocation8], %s134
          %s136 = smul.u32 4, %s15
          %s138 = ssub.s32 128, 128
          %139 = vsyncadd %s132, %s138
          %s140 = smul.addr %s136, 32
          %s141 = scalar_lea.hbm %s1, %s140
          %s143 = sshll.u32 %s135, 4
          %s144 = int_to_ptr.vmem [resolvable:$true] %s143
          %146 = dma.hbm_to_vmem [thread:$0]  %s141, 128, %s144, %s132
        $region24: #{tpu_custom_call.1} parent=15 // pred_fallthru
          _
      $region16: #{tpu_custom_call.1} parent=5 // pred_fallthru
        _
      %p147 = scmp.le.s32.totalorder 1, %s15
      %p148 = scmp.lt.s32.totalorder %s15, 5
      %p149 = pnand %p147, %p148
      %p150 = pneg %p149
      // Predicated region
      $region25: #{tpu_custom_call.1} parent=5 // pred_check
        _
      $region26: #{tpu_custom_call.1} parent=5 // pred_check_branch
        %152 = sbr.rel (%p149) target = $region28
      $region27: #{tpu_custom_call.1} parent=5 // pred_region
        %s153 = ssub.s32 %s15, 1
        %s154 = sand.u32 %s28, 1
        %s155 = scalar_lea.sflag [#allocation6], %s154
        %s156 = sand.u32 %s28, 1
        %s157 = smul.addr %s156, 32
        %s158 = scalar_lea.vmem [#allocation5], %s157
        // Predicated region
        $region29: #{tpu_custom_call.1} parent=27 // pred_check
          %p159 = pneg %p41
        $region30: #{tpu_custom_call.1} parent=27 // pred_check_branch
          %161 = sbr.rel (%p159) target = $region32
        $region31: #{tpu_custom_call.1} parent=27 // pred_region
          %162 = dma.done %s155, 512
        $region32: #{tpu_custom_call.1} parent=27 // pred_fallthru
          _
        %s163 = sand.u32 %s54, 1
        %s164 = scalar_lea.sflag [#allocation9], %s163
        %s165 = sand.u32 %s54, 1
        %s166 = smul.addr %s165, 8
        %s167 = scalar_lea.vmem [#allocation8], %s166
        // Predicated region
        $region33: #{tpu_custom_call.1} parent=27 // pred_check
          %p168 = pneg %p67
        $region34: #{tpu_custom_call.1} parent=27 // pred_check_branch
          %170 = sbr.rel (%p168) target = $region36
        $region35: #{tpu_custom_call.1} parent=27 // pred_region
          %171 = dma.done %s164, 128
        $region36: #{tpu_custom_call.1} parent=27 // pred_fallthru
          _
        %s172 = sand.u32 %s28, 1
        %s173 = scalar_lea.sflag [#allocation6], %s172
        %s174 = sand.u32 %s28, 1
        %s175 = smul.addr %s174, 32
        %s176 = scalar_lea.vmem [#allocation5], %s175
        %p177 = pneg %p41
        %p178 = pneg %p38
        %s179 = sand.u32 %s54, 1
        %s180 = scalar_lea.sflag [#allocation9], %s179
        %s181 = sand.u32 %s54, 1
        %s182 = smul.addr %s181, 8
        %s183 = scalar_lea.vmem [#allocation8], %s182
        %p184 = pneg %p67
        %p185 = pneg %p64
        %p186 = pneg %p88
        %p187 = pneg %p85
        %s188 = smul.u32 4, %s20
        %s189 = smul.u32 4, %s20
        %p190 = scmp.eq.s32.totalorder %s20, 0
        // Predicated region
        $region37: #{tpu_custom_call.1} parent=27 // pred_check
          %p191 = pneg %p190
        $region38: #{tpu_custom_call.1} parent=27 // pred_check_branch
          %193 = sbr.rel (%p191) target = $region40
        $region39: #{tpu_custom_call.1} parent=27 // pred_region
          %vm194 = vcmask 25600
          %195 = vst.msk [vmem:[#allocation2] sm:$0x3] %vm194, 0.0
          %196 = vst.msk [vmem:[#allocation3] sm:$0x3] %vm194, 0.0
          %197 = vst.msk [vmem:[#allocation4] sm:$0x3] %vm194, 0.0
        $region40: #{tpu_custom_call.1} parent=27 // pred_fallthru
          _
        %v198 = vld [vmem:[%s158] sm:$0xff]
        %v199 = vld [vmem:[%s158 + $0x8] sm:$0xff]
        %v200 = vld [vmem:[%s158 + $0x10] sm:$0xff]
        %v201 = vld [vmem:[%s158 + $0x18] sm:$0xff]
        %v202 = vld [vmem:[%s167] sm:$0xff]
        %v203 = vxor.u32 %v198, 2147483648
        %v204 = vxor.u32 %v199, 2147483648
        %v205 = vxor.u32 %v200, 2147483648
        %v206 = vxor.u32 %v201, 2147483648
        %v207 = vmul.f32 %v203, 1.442695
        %v208 = vpow.pop %v207
        %v209 = vmul.f32 %v204, 1.442695
        %v210 = vpow.pop %v209
        %v211 = vmul.f32 %v205, 1.442695
        %v212 = vpow.pop %v211
        %v213 = vmul.f32 %v206, 1.442695
        %v214 = vpow.pop %v213
        %v215 = vadd.f32 %v208, 1.0
        %v216 = vadd.f32 %v210, 1.0
        %v217 = vadd.f32 %v212, 1.0
        %v218 = vadd.f32 %v214, 1.0
        %v219 = vrcp.pop %v215
        %v220 = vmul.f32 1.0, %v219
        %v221 = vrcp.pop %v216
        %v222 = vmul.f32 1.0, %v221
        %v223 = vrcp.pop %v217
        %v224 = vmul.f32 1.0, %v223
        %v225 = vrcp.pop %v218
        %v226 = vmul.f32 1.0, %v225
        %v227 = vld [vmem:[#allocation3] sm:$0x3]
        %v232 = vcombine.high %v220, %v220
        %v233 = vcombine.high %v222, %v222
        %v234 = vcombine.high %v224, %v224
        %v235 = vcombine.high %v226, %v226
        %vm240 = vcmask 1043456
        %v241 = vsel %vm240, %v220, 0.0
        %v242 = vsel %vm240, %v232, 0.0
        %v243 = vadd.f32 %v241, %v242
        %v244 = vsel %vm240, %v222, 0.0
        %v245 = vadd.f32 %v243, %v244
        %v246 = vsel %vm240, %v233, 0.0
        %v247 = vadd.f32 %v245, %v246
        %248 = vadd.xlane.f32.xlu0 %v247
        %v249 = vpop.xlane.xlu0 %248
        %v250 = vsel %vm240, %v224, 0.0
        %v251 = vsel %vm240, %v234, 0.0
        %v252 = vadd.f32 %v250, %v251
        %v253 = vsel %vm240, %v226, 0.0
        %v254 = vadd.f32 %v252, %v253
        %v255 = vsel %vm240, %v235, 0.0
        %v256 = vadd.f32 %v254, %v255
        %257 = vadd.xlane.f32.xlu0 %v256
        %v258 = vpop.xlane.xlu0 %257
        %v261 = vlaneseq
        %v262 = vand.u32 %v261, 127
        %v263 = vlaneseq
        %v264 = vshrl.u32 %v263, 7
        %v265 = vsub.s32 %v262, %v264
        %v266 = vrot.slane %v249, %v265
        %v267 = vlaneseq
        %v268 = vshrl.u32 %v267, 7
        %v269 = vsub.s32 %v262, %v268
        %v270 = vrot.slane %v258, %v269
        %vm271 = vcmask 1041409
        %v272 = vsel %vm271, %v270, %v266
        %v274 = vadd.f32 %v227, %v272
        %vm275 = vcmask 25600
        %276 = vst.msk [vmem:[#allocation3] sm:$0x3] %vm275, %v274
        %vm277 = vcmp.eq.s32.totalorder %v202, 0
        %v279 = vunpack.c.l.s4 1983009808
        %v280 = vunpack.c.0.s8 %v279
        %v281 = vlaneseq
        %v282 = vshrl.u32 %v281, 7
        %v283 = vsub.s32 %v280, %v282
        %v284 = vrot.slane %v220, %v283
        %v286 = vunpack.c.l.s4 1983009808
        %v287 = vunpack.c.0.s8 %v286
        %v288 = vlaneseq
        %v289 = vshrl.u32 %v288, 7
        %v290 = vsub.s32 %v287, %v289
        %v291 = vrot.slane %v222, %v290
        %v292 = vcombine.low %v284, %v291
        %v294 = vunpack.c.l.s4 1983009808
        %v295 = vunpack.c.0.s8 %v294
        %v296 = vlaneseq
        %v297 = vshrl.u32 %v296, 7
        %v298 = vsub.s32 %v295, %v297
        %v299 = vrot.slane %v224, %v298
        %v301 = vunpack.c.l.s4 1983009808
        %v302 = vunpack.c.0.s8 %v301
        %v303 = vlaneseq
        %v304 = vshrl.u32 %v303, 7
        %v305 = vsub.s32 %v302, %v304
        %v306 = vrot.slane %v226, %v305
        %v307 = vcombine.low %v299, %v306
        %vm308 = vcmask 1044484
        %v309 = vsel %vm308, %v292, %v292
        %vm310 = vcmask 1046534
        %v311 = vsel %vm310, %v292, %v309
        %v312 = vrot.slane %v307, 7
        %v313 = vsel %vm271, %v312, %v311
        %vm314 = vcmask 1043459
        %v315 = vsel %vm314, %v312, %v313
        %vm316 = vcmask 1045509
        %v317 = vsel %vm316, %v312, %v315
        %vm318 = vcmask 1047559
        %v319 = vsel %vm318, %v312, %v317
        %v321 = vsel %vm277, %v319, 0.0
        %v323 = vcombine.high %v321, %v321
        %v325 = vunpack.c.l.s4 1983009808
        %v326 = vunpack.c.0.s8 %v325
        %v327 = vlaneseq
        %v328 = vshrl.u32 %v327, 7
        %v329 = vsub.s32 %v326, %v328
        %v330 = vrot.slane %v321, %v329
        %v332 = vunpack.c.l.s4 1983009808
        %v333 = vunpack.c.0.s8 %v332
        %v334 = vlaneseq
        %v335 = vshrl.u32 %v334, 7
        %v336 = vsub.s32 %v333, %v335
        %v337 = vrot.slane %v323, %v336
        %v338 = vcombine.high %v330, %v330
        %v339 = vcombine.high %v337, %v337
        %vm344 = vcmask 1041408
        %v345 = vsel %vm344, %v330, 0.0
        %v346 = vsel %vm344, %v338, 0.0
        %v347 = vadd.f32 %v345, %v346
        %v348 = vsel %vm344, %v337, 0.0
        %v349 = vadd.f32 %v347, %v348
        %v350 = vsel %vm344, %v339, 0.0
        %v351 = vadd.f32 %v349, %v350
        %352 = vadd.xlane.f32.xlu0 %v351
        %v353 = vpop.xlane.xlu0 %352
        %v354 = vsel %vm277, 1, 0
        %v355 = vcvt.s32.f32 %v354
        %v357 = vcombine.high %v355, %v355
        %v359 = vunpack.c.l.s4 1983009808
        %v360 = vunpack.c.0.s8 %v359
        %v361 = vlaneseq
        %v362 = vshrl.u32 %v361, 7
        %v363 = vsub.s32 %v360, %v362
        %v364 = vrot.slane %v355, %v363
        %v366 = vunpack.c.l.s4 1983009808
        %v367 = vunpack.c.0.s8 %v366
        %v368 = vlaneseq
        %v369 = vshrl.u32 %v368, 7
        %v370 = vsub.s32 %v367, %v369
        %v371 = vrot.slane %v357, %v370
        %v372 = vcombine.high %v364, %v364
        %v373 = vcombine.high %v371, %v371
        %v378 = vsel %vm344, %v364, 0.0
        %v379 = vsel %vm344, %v372, 0.0
        %v380 = vadd.f32 %v378, %v379
        %v381 = vsel %vm344, %v371, 0.0
        %v382 = vadd.f32 %v380, %v381
        %v383 = vsel %vm344, %v373, 0.0
        %v384 = vadd.f32 %v382, %v383
        %385 = vadd.xlane.f32.xlu0 %v384
        %v386 = vpop.xlane.xlu0 %385
        %vm387 = vcmp.eq.s32.totalorder %v202, 1
        %v388 = vrot.slane %v292, 1
        %v389 = vsel %vm308, %v388, %v388
        %v390 = vsel %vm310, %v388, %v389
        %v391 = vsel %vm271, %v307, %v390
        %v392 = vsel %vm314, %v307, %v391
        %v393 = vsel %vm316, %v307, %v392
        %v394 = vsel %vm318, %v307, %v393
        %v396 = vsel %vm387, %v394, 0.0
        %v398 = vcombine.high %v396, %v396
        %v400 = vunpack.c.l.s4 1983009808
        %v401 = vunpack.c.0.s8 %v400
        %v402 = vlaneseq
        %v403 = vshrl.u32 %v402, 7
        %v404 = vsub.s32 %v401, %v403
        %v405 = vrot.slane %v396, %v404
        %v407 = vunpack.c.l.s4 1983009808
        %v408 = vunpack.c.0.s8 %v407
        %v409 = vlaneseq
        %v410 = vshrl.u32 %v409, 7
        %v411 = vsub.s32 %v408, %v410
        %v412 = vrot.slane %v398, %v411
        %v413 = vcombine.high %v405, %v405
        %v414 = vcombine.high %v412, %v412
        %v419 = vsel %vm344, %v405, 0.0
        %v420 = vsel %vm344, %v413, 0.0
        %v421 = vadd.f32 %v419, %v420
        %v422 = vsel %vm344, %v412, 0.0
        %v423 = vadd.f32 %v421, %v422
        %v424 = vsel %vm344, %v414, 0.0
        %v425 = vadd.f32 %v423, %v424
        %426 = vadd.xlane.f32.xlu0 %v425
        %v427 = vpop.xlane.xlu0 %426
        %v428 = vsel %vm387, 1, 0
        %v429 = vcvt.s32.f32 %v428
        %v431 = vcombine.high %v429, %v429
        %v433 = vunpack.c.l.s4 1983009808
        %v434 = vunpack.c.0.s8 %v433
        %v435 = vlaneseq
        %v436 = vshrl.u32 %v435, 7
        %v437 = vsub.s32 %v434, %v436
        %v438 = vrot.slane %v429, %v437
        %v440 = vunpack.c.l.s4 1983009808
        %v441 = vunpack.c.0.s8 %v440
        %v442 = vlaneseq
        %v443 = vshrl.u32 %v442, 7
        %v444 = vsub.s32 %v441, %v443
        %v445 = vrot.slane %v431, %v444
        %v446 = vcombine.high %v438, %v438
        %v447 = vcombine.high %v445, %v445
        %v452 = vsel %vm344, %v438, 0.0
        %v453 = vsel %vm344, %v446, 0.0
        %v454 = vadd.f32 %v452, %v453
        %v455 = vsel %vm344, %v445, 0.0
        %v456 = vadd.f32 %v454, %v455
        %v457 = vsel %vm344, %v447, 0.0
        %v458 = vadd.f32 %v456, %v457
        %459 = vadd.xlane.f32.xlu0 %v458
        %v460 = vpop.xlane.xlu0 %459
        %vm461 = vcmp.eq.s32.totalorder %v202, 2
        %v462 = vcombine.high %v284, %v291
        %v463 = vcombine.high %v299, %v306
        %v464 = vsel %vm308, %v462, %v462
        %v465 = vsel %vm310, %v462, %v464
        %v466 = vrot.slane %v463, 7
        %v467 = vsel %vm271, %v466, %v465
        %v468 = vsel %vm314, %v466, %v467
        %v469 = vsel %vm316, %v466, %v468
        %v470 = vsel %vm318, %v466, %v469
        %v472 = vsel %vm461, %v470, 0.0
        %v474 = vcombine.high %v472, %v472
        %v476 = vunpack.c.l.s4 1983009808
        %v477 = vunpack.c.0.s8 %v476
        %v478 = vlaneseq
        %v479 = vshrl.u32 %v478, 7
        %v480 = vsub.s32 %v477, %v479
        %v481 = vrot.slane %v472, %v480
        %v483 = vunpack.c.l.s4 1983009808
        %v484 = vunpack.c.0.s8 %v483
        %v485 = vlaneseq
        %v486 = vshrl.u32 %v485, 7
        %v487 = vsub.s32 %v484, %v486
        %v488 = vrot.slane %v474, %v487
        %v489 = vcombine.high %v481, %v481
        %v490 = vcombine.high %v488, %v488
        %v495 = vsel %vm344, %v481, 0.0
        %v496 = vsel %vm344, %v489, 0.0
        %v497 = vadd.f32 %v495, %v496
        %v498 = vsel %vm344, %v488, 0.0
        %v499 = vadd.f32 %v497, %v498
        %v500 = vsel %vm344, %v490, 0.0
        %v501 = vadd.f32 %v499, %v500
        %502 = vadd.xlane.f32.xlu0 %v501
        %v503 = vpop.xlane.xlu0 %502
        %v504 = vsel %vm461, 1, 0
        %v505 = vcvt.s32.f32 %v504
        %v507 = vcombine.high %v505, %v505
        %v509 = vunpack.c.l.s4 1983009808
        %v510 = vunpack.c.0.s8 %v509
        %v511 = vlaneseq
        %v512 = vshrl.u32 %v511, 7
        %v513 = vsub.s32 %v510, %v512
        %v514 = vrot.slane %v505, %v513
        %v516 = vunpack.c.l.s4 1983009808
        %v517 = vunpack.c.0.s8 %v516
        %v518 = vlaneseq
        %v519 = vshrl.u32 %v518, 7
        %v520 = vsub.s32 %v517, %v519
        %v521 = vrot.slane %v507, %v520
        %v522 = vcombine.high %v514, %v514
        %v523 = vcombine.high %v521, %v521
        %v528 = vsel %vm344, %v514, 0.0
        %v529 = vsel %vm344, %v522, 0.0
        %v530 = vadd.f32 %v528, %v529
        %v531 = vsel %vm344, %v521, 0.0
        %v532 = vadd.f32 %v530, %v531
        %v533 = vsel %vm344, %v523, 0.0
        %v534 = vadd.f32 %v532, %v533
        %535 = vadd.xlane.f32.xlu0 %v534
        %v536 = vpop.xlane.xlu0 %535
        %vm537 = vcmp.eq.s32.totalorder %v202, 3
        %v538 = vrot.slane %v462, 1
        %v539 = vsel %vm308, %v538, %v538
        %v540 = vsel %vm310, %v538, %v539
        %v541 = vsel %vm271, %v463, %v540
        %v542 = vsel %vm314, %v463, %v541
        %v543 = vsel %vm316, %v463, %v542
        %v544 = vsel %vm318, %v463, %v543
        %v546 = vsel %vm537, %v544, 0.0
        %v548 = vcombine.high %v546, %v546
        %v550 = vunpack.c.l.s4 1983009808
        %v551 = vunpack.c.0.s8 %v550
        %v552 = vlaneseq
        %v553 = vshrl.u32 %v552, 7
        %v554 = vsub.s32 %v551, %v553
        %v555 = vrot.slane %v546, %v554
        %v557 = vunpack.c.l.s4 1983009808
        %v558 = vunpack.c.0.s8 %v557
        %v559 = vlaneseq
        %v560 = vshrl.u32 %v559, 7
        %v561 = vsub.s32 %v558, %v560
        %v562 = vrot.slane %v548, %v561
        %v563 = vcombine.high %v555, %v555
        %v564 = vcombine.high %v562, %v562
        %v569 = vsel %vm344, %v555, 0.0
        %v570 = vsel %vm344, %v563, 0.0
        %v571 = vadd.f32 %v569, %v570
        %v572 = vsel %vm344, %v562, 0.0
        %v573 = vadd.f32 %v571, %v572
        %v574 = vsel %vm344, %v564, 0.0
        %v575 = vadd.f32 %v573, %v574
        %576 = vadd.xlane.f32.xlu0 %v575
        %v577 = vpop.xlane.xlu0 %576
        %v578 = vsel %vm537, 1, 0
        %v579 = vcvt.s32.f32 %v578
        %v581 = vcombine.high %v579, %v579
        %v583 = vunpack.c.l.s4 1983009808
        %v584 = vunpack.c.0.s8 %v583
        %v585 = vlaneseq
        %v586 = vshrl.u32 %v585, 7
        %v587 = vsub.s32 %v584, %v586
        %v588 = vrot.slane %v579, %v587
        %v590 = vunpack.c.l.s4 1983009808
        %v591 = vunpack.c.0.s8 %v590
        %v592 = vlaneseq
        %v593 = vshrl.u32 %v592, 7
        %v594 = vsub.s32 %v591, %v593
        %v595 = vrot.slane %v581, %v594
        %v596 = vcombine.high %v588, %v588
        %v597 = vcombine.high %v595, %v595
        %v602 = vsel %vm344, %v588, 0.0
        %v603 = vsel %vm344, %v596, 0.0
        %v604 = vadd.f32 %v602, %v603
        %v605 = vsel %vm344, %v595, 0.0
        %v606 = vadd.f32 %v604, %v605
        %v607 = vsel %vm344, %v597, 0.0
        %v608 = vadd.f32 %v606, %v607
        %609 = vadd.xlane.f32.xlu0 %v608
        %v610 = vpop.xlane.xlu0 %609
        %v611 = vld [vmem:[#allocation2] sm:$0x3]
        %vm612 = vcmask 7168
        %v613 = vsel %vm612, %v353, %v427
        %vm614 = vcmask 15360
        %v615 = vsel %vm614, %v613, %v503
        %vm616 = vcmask 23552
        %v617 = vsel %vm616, %v615, %v577
        %v618 = vadd.f32 %v611, %v617
        %619 = vst.msk [vmem:[#allocation2] sm:$0x3] %vm275, %v618
        %v620 = vld [vmem:[#allocation4] sm:$0x3]
        %v621 = vsel %vm612, %v386, %v460
        %v622 = vsel %vm614, %v621, %v536
        %v623 = vsel %vm616, %v622, %v610
        %v624 = vadd.f32 %v620, %v623
        %625 = vst.msk [vmem:[#allocation4] sm:$0x3] %vm275, %v624
        %p626 = scmp.eq.s32.totalorder %s20, 3
        // Predicated region
        $region41: #{tpu_custom_call.1} parent=27 // pred_check
          %p627 = pneg %p626
        $region42: #{tpu_custom_call.1} parent=27 // pred_check_branch
          %629 = sbr.rel (%p627) target = $region44
        $region43: #{tpu_custom_call.1} parent=27 // pred_region
          %v630 = vld [vmem:[#allocation2] sm:$0x3]
          %v631 = vld [vmem:[#allocation3] sm:$0x3]
          %v632 = vsub.f32 %v631, %v630
          %v633 = vld [vmem:[#allocation4] sm:$0x3]
          %v634 = vsub.f32 %v633, %v630
          %v635 = vadd.f32 %v630, 1e-07
          %v636 = vmul.f32 %v632, 0.7
          %v637 = vadd.f32 %v630, %v636
          %v638 = vmul.f32 %v634, 0.3
          %v639 = vadd.f32 %v637, %v638
          %v640 = vadd.f32 %v639, 1e-07
          %v641 = vrcp.pop %v640
          %v642 = vmul.f32 %v635, %v641
          %v643 = vsub.f32 1.0, %v642
          %v644 = vmul.f32 %v643, %v643
          %v645 = vsel %vm275, %v644, 0.0
          %646 = vadd.xlane.f32.xlu0 %v645
          %v647 = vpop.xlane.xlu0 %646
          %v648 = vrot.slane %v647, 4
          %v649 = vadd.f32 %v647, %v648
          %v650 = vrot.slane %v649, 2
          %v651 = vadd.f32 %v649, %v650
          %v652 = vrot.slane %v651, 1
          %v653 = vadd.f32 %v651, %v652
          %s654 = vtos %v653
          %s655 = smul.f32 %s654, 0.125
          %v656 = vstv %s655
          %vm657 = vcmask 0
          %658 = vst.msk [vmem:[#allocation10] sm:$0x1] %vm657, %v656
        $region44: #{tpu_custom_call.1} parent=27 // pred_fallthru
          _
        // Predicated region
        $region45: #{tpu_custom_call.1} parent=27 // pred_check
          %p659 = pneg %p85
        $region46: #{tpu_custom_call.1} parent=27 // pred_check_branch
          %661 = sbr.rel (%p659) target = $region48
        $region47: #{tpu_custom_call.1} parent=27 // pred_region
          %s663 = ssub.s32 16, 16
          %664 = vsyncadd [#allocation7], %s663
          %s666 = sshll.u32 [#allocation10], 4
          %s667 = int_to_ptr.vmem [resolvable:$true] %s666
          %669 = dma.vmem_to_hbm [thread:$0]  %s667, 16, %s2, [#allocation7]
        $region48: #{tpu_custom_call.1} parent=27 // pred_fallthru
          _
        // Predicated region
        $region49: #{tpu_custom_call.1} parent=27 // pred_check
          %p670 = pneg %p85
        $region50: #{tpu_custom_call.1} parent=27 // pred_check_branch
          %672 = sbr.rel (%p670) target = $region52
        $region51: #{tpu_custom_call.1} parent=27 // pred_region
          %673 = dma.done [#allocation7], 16
        $region52: #{tpu_custom_call.1} parent=27 // pred_fallthru
          _
      $region28: #{tpu_custom_call.1} parent=5 // pred_fallthru
        _
      %p674 = scmp.le.s32.totalorder 2, %s15
      // Predicated region
      $region53: #{tpu_custom_call.1} parent=5 // pred_check
        %p675 = pneg %p674
      $region54: #{tpu_custom_call.1} parent=5 // pred_check_branch
        %677 = sbr.rel (%p675) target = $region56
      $region55: #{tpu_custom_call.1} parent=5 // pred_region
        %s678 = ssub.s32 %s15, 2
      $region56: #{tpu_custom_call.1} parent=5 // pred_fallthru
        _
    $region6: #{tpu_custom_call.1} parent=1 // loop_footer
      %s19 = sadd.s32 1, %s15
    $region7: #{tpu_custom_call.1} parent=1 // loop_footer_branch
      %14 = sbr.rel target = $region3
    $region8: #{tpu_custom_call.1} parent=1 // loop_exit
      _
    %679 = vsyncpa [#allocation6], 1
    %s680 = scalar_lea.sflag [#allocation6], 1
    %681 = vsyncpa %s680, 1
    %682 = vsyncpa [#allocation9], 1
    %s683 = scalar_lea.sflag [#allocation9], 1
    %684 = vsyncpa %s683, 1
    %685 = vsyncpa [#allocation7], 1
    %s686 = scalar_lea.sflag [#allocation7], 1
    %687 = vsyncpa %s686, 1

</llo_original>
